<compile_context>
chip_gen: v6e
topology: v6e:2x2x1
jax: 0.10.0
libtpu: 0.0.40
codegen_flags: <defaults>
</compile_context>

<pallas_src>
import functools

import jax
import jax.numpy as jnp
from jax.experimental import pallas as pl
from jax.experimental.pallas import tpu as pltpu


_LANE_TILE = 16384   # lanes per step; multiple of 128; ~1.3 MiB/step @ R=21 f32
_MIN_STEPS = 4       # keep the grid >= this many steps when the batch allows


def _cdiv(a, b):
    return -(-a // b)


def _choose_blocks(batch, n_sp):
    """Pick (batch_block, lane_tile) so each step moves ~1 MiB+ and the grid
    keeps enough steps for megacore sharding / double buffering."""
    if n_sp > _LANE_TILE:
        # Balance the lane tiles (128-aligned) instead of one tiny tail tile.
        num_tiles = _cdiv(n_sp, _LANE_TILE)
        t = _cdiv(_cdiv(n_sp, num_tiles), 128) * 128
        return 1, t
    # Small / medium feature map: whole lane axis in one block; fold several
    # batches into a step instead of squeezing batch to 1.
    max_bblk = max(1, _LANE_TILE // max(n_sp, 1))
    min_steps = min(_MIN_STEPS, batch)
    b_blk = 1
    for cand in range(1, batch + 1):
        if batch % cand or cand > max_bblk:
            continue
        if batch // cand >= min_steps:
            b_blk = cand
    return b_blk, n_sp


def _decode_kernel(grid_ref, pred_ref, out_ref, *, attrs, strides,
                   anchor_scales):
    """One (lane-tile, batch-block) step.

    grid_ref : VMEM (3, T) f32      pre-scaled grid offsets (gx*sw, gy*sh, gz*sd)
    pred_ref : VMEM (Bb, R, T)      raw predictions (native dtype)
    out_ref  : VMEM (Bb, R, T)      decoded output
    """
    sw, sh, sd = strides
    p = pred_ref[...].astype(jnp.float32)
    # sigmoid via tanh: exactly 1/(1+exp(-x)), one EUP op per element.
    sig = 0.5 * jnp.tanh(0.5 * p) + 0.5

    # Objectness / class rows keep sigmoid with unit scale; the box rows are
    # overwritten below with lane-dense (Bb, 1, T) patch stores.
    out_ref[...] = sig.astype(out_ref.dtype)

    gx = grid_ref[0:1, :]                       # (1, T)
    gy = grid_ref[1:2, :]
    gz = grid_ref[2:3, :]
    for a, a_scale in enumerate(anchor_scales):
        r = a * attrs
        out_ref[:, r + 0:r + 1, :] = (
            sig[:, r + 0:r + 1, :] * sw + gx).astype(out_ref.dtype)
        out_ref[:, r + 1:r + 2, :] = (
            sig[:, r + 1:r + 2, :] * sh + gy).astype(out_ref.dtype)
        out_ref[:, r + 2:r + 3, :] = (
            sig[:, r + 2:r + 3, :] * sd + gz).astype(out_ref.dtype)
        # exp() only on the A length rows (EUP reduction; no discarded inf).
        out_ref[:, r + 3:r + 4, :] = (
            jnp.exp(p[:, r + 3:r + 4, :]) * a_scale).astype(out_ref.dtype)


def decode_box(inp, anchors, num_classes, img_size, *,
               out_dtype=jnp.float32, lane_dense=False):
    """JAX/Pallas equivalent of DecodeBox.forward.

    inp: (B, A*(5+num_classes), D, H, W), any float dtype (bf16 halves HBM
         traffic).  img_size = (W, H, D).
    Returns (B, A*D*H*W, 5+num_classes) in `out_dtype`; with lane_dense=True
    returns the lane-dense (B, A*(5+num_classes), D*H*W) kernel output and
    skips the trailing transpose (which is a full extra read+write).
    """
    B = int(inp.shape[0])
    A = len(anchors)
    attrs = 5 + num_classes
    R = A * attrs
    D, H, W = int(inp.shape[2]), int(inp.shape[3]), int(inp.shape[4])
    assert inp.shape[1] == R

    stride_d = img_size[2] / D
    stride_h = img_size[1] / H
    stride_w = img_size[0] / W
    anchor_scales = tuple(float((aw / stride_w) * stride_w)
                          for aw, _, _ in anchors)

    # Pre-scaled grid offsets for the flattened (z, y, x) spatial index.
    n_sp = D * H * W
    n = jnp.arange(n_sp, dtype=jnp.int32)
    grid_off = jnp.stack(
        [(n % W).astype(jnp.float32) * stride_w,
         ((n // W) % H).astype(jnp.float32) * stride_h,
         (n // (W * H)).astype(jnp.float32) * stride_d], axis=0)   # (3, n_sp)

    # Native dtype, no pad: ragged edge blocks are masked by Pallas.
    pred = inp.reshape(B, R, n_sp)

    b_blk, T = _choose_blocks(B, n_sp)
    num_tiles = _cdiv(n_sp, T)
    num_b = B // b_blk                     # b_blk always divides B

    kernel = functools.partial(
        _decode_kernel, attrs=attrs,
        strides=(stride_w, stride_h, stride_d),
        anchor_scales=anchor_scales)

    cost = pl.CostEstimate(
        flops=4 * B * R * n_sp,
        transcendentals=B * (R + A) * n_sp,
        bytes_accessed=(B * R * n_sp *
                        (inp.dtype.itemsize + jnp.dtype(out_dtype).itemsize)
                        + 3 * n_sp * 4),
    )

    out = pl.pallas_call(
        kernel,
        out_shape=jax.ShapeDtypeStruct((B, R, n_sp), out_dtype),
        grid=(num_tiles, num_b),
        in_specs=[
            # (tile, batch) grid order => grid-offset block index is constant
            # across consecutive batch steps, so it is not re-DMA'd per batch.
            pl.BlockSpec((3, T), lambda t, b: (0, t)),
            pl.BlockSpec((b_blk, R, T), lambda t, b: (b, 0, t)),
        ],
        out_specs=pl.BlockSpec((b_blk, R, T), lambda t, b: (b, 0, t)),
        compiler_params=pltpu.CompilerParams(
            dimension_semantics=("parallel", "arbitrary")),
        cost_estimate=cost,
    )(grid_off, pred)

    if lane_dense:
        return out
    # PyTorch output ordering: (B, A*D*H*W, 5+C).
    # TODO(synk): fuse this reorder into the downstream consumer (NMS/top-k);
    # it is a full extra read+write of the decoded tensor.
    return out.reshape(B, A, attrs, n_sp).transpose(0, 1, 3, 2).reshape(
        B, A * n_sp, attrs)


def decode_box_ref(inp, anchors, num_classes, img_size):
    """Pure-JAX reference mirroring the PyTorch forward, for verification."""
    B = inp.shape[0]
    A = len(anchors)
    attrs = 5 + num_classes
    D, H, W = int(inp.shape[2]), int(inp.shape[3]), int(inp.shape[4])
    sd, sh, sw = img_size[2] / D, img_size[1] / H, img_size[0] / W

    pred = inp.reshape(B, A, attrs, D, H, W).transpose(0, 1, 3, 4, 5, 2)
    sig = jax.nn.sigmoid
    x, y, z = sig(pred[..., 0]), sig(pred[..., 1]), sig(pred[..., 2])
    l = pred[..., 3]
    conf = sig(pred[..., 4])
    cls = sig(pred[..., 5:])

    gx = jnp.broadcast_to(jnp.arange(W, dtype=jnp.float32), (B, A, D, H, W))
    gy = jnp.broadcast_to(jnp.arange(H, dtype=jnp.float32)[:, None],
                          (B, A, D, H, W))
    gz = jnp.broadcast_to(jnp.arange(D, dtype=jnp.float32)[:, None, None],
                          (B, A, D, H, W))
    aw = jnp.array([a[0] / sw for a in anchors],
                   dtype=jnp.float32).reshape(1, A, 1, 1, 1)

    boxes = jnp.stack([(x + gx) * sw, (y + gy) * sh, (z + gz) * sd,
                       jnp.exp(l) * aw * sw], axis=-1).reshape(B, -1, 4)
    return jnp.concatenate(
        [boxes, conf.reshape(B, -1, 1), cls.reshape(B, -1, num_classes)], -1)


if __name__ == "__main__":
    # Small, deterministic configuration consistent with the module.
    anchors = [(8.0, 8.0, 8.0), (16.0, 16.0, 16.0), (12.0, 10.0, 6.0)]
    num_classes = 2
    img_size = (32, 32, 32)          # (W, H, D)
    B, D, H, W = 2, 8, 8, 8
    A = len(anchors)
    bbox_attrs = 5 + num_classes

    key = jax.random.PRNGKey(0)
    inp = jax.random.normal(key, (B, A * bbox_attrs, D, H, W), dtype=jnp.float32)

    out = decode_box(inp, anchors, num_classes, img_size)
    out = jax.block_until_ready(out)

    ref = decode_box_ref(inp, anchors, num_classes, img_size)
    assert out.shape == (B, A * D * H * W, bbox_attrs), out.shape
    assert jnp.allclose(out, ref, rtol=1e-5, atol=1e-5), "mismatch vs reference"

    print("KERNEL_OK")
</pallas_src>

<mosaic_0001>
module attributes {stable_mosaic.version = 11 : i64} {
  func.func @_decode_kernel(%arg0: i32, %arg1: i32, %arg2: memref<3x512xf32, #tpu.memory_space<vmem>>, %arg3: memref<1x21x512xf32, #tpu.memory_space<vmem>>, %arg4: memref<1x21x512xf32, #tpu.memory_space<vmem>>) attributes {dimension_semantics = [#tpu.dimension_semantics<parallel>, #tpu.dimension_semantics<arbitrary>], iteration_bounds = array<i64: 1, 2>, scalar_prefetch = 0 : i64, scratch_operands = 0 : i64, tpu.core_type = #tpu.core_type<tc>, window_params = [{transform_indices = @transform_0, window_bounds = array<i64: 3, 512>}, {transform_indices = @transform_1, window_bounds = array<i64: 1, 21, 512>}, {transform_indices = @transform_2, window_bounds = array<i64: 1, 21, 512>}]} {
    %c0 = arith.constant 0 : index
    %c0_0 = arith.constant 0 : index
    %c0_1 = arith.constant 0 : index
    %0 = vector.load %arg3[%c0, %c0_0, %c0_1] : memref<1x21x512xf32, #tpu.memory_space<vmem>>, vector<1x21x512xf32>
    %cst = arith.constant 5.000000e-01 : f32
    %1 = vector.broadcast %cst : f32 to vector<1x21x512xf32>
    %2 = arith.mulf %1, %0 : vector<1x21x512xf32>
    %3 = math.tanh %2 : vector<1x21x512xf32>
    %cst_2 = arith.constant 5.000000e-01 : f32
    %4 = vector.broadcast %cst_2 : f32 to vector<1x21x512xf32>
    %5 = arith.mulf %4, %3 : vector<1x21x512xf32>
    %cst_3 = arith.constant 5.000000e-01 : f32
    %6 = vector.broadcast %cst_3 : f32 to vector<1x21x512xf32>
    %7 = arith.addf %5, %6 : vector<1x21x512xf32>
    %c0_4 = arith.constant 0 : index
    %c0_5 = arith.constant 0 : index
    %c0_6 = arith.constant 0 : index
    %8 = vector.load %arg4[%c0_4, %c0_5, %c0_6] : memref<1x21x512xf32, #tpu.memory_space<vmem>>, vector<1x21x512xf32>
    tpu.vector_store %arg4[%c0_4, %c0_5, %c0_6], %7 {strides = array<i32>} : memref<1x21x512xf32, #tpu.memory_space<vmem>>, vector<1x21x512xf32>,
    %c0_7 = arith.constant 0 : index
    %c0_8 = arith.constant 0 : index
    %9 = vector.load %arg2[%c0_7, %c0_8] : memref<3x512xf32, #tpu.memory_space<vmem>>, vector<1x512xf32>
    %c1 = arith.constant 1 : index
    %c0_9 = arith.constant 0 : index
    %10 = vector.load %arg2[%c1, %c0_9] : memref<3x512xf32, #tpu.memory_space<vmem>>, vector<1x512xf32>
    %c2 = arith.constant 2 : index
    %c0_10 = arith.constant 0 : index
    %11 = vector.load %arg2[%c2, %c0_10] : memref<3x512xf32, #tpu.memory_space<vmem>>, vector<1x512xf32>
    %12 = vector.extract_strided_slice %7 {offsets = [0, 0, 0], sizes = [1, 1, 512], strides = [1, 1, 1]} : vector<1x21x512xf32> to vector<1x1x512xf32>
    %cst_11 = arith.constant 4.000000e+00 : f32
    %13 = vector.broadcast %cst_11 : f32 to vector<1x1x512xf32>
    %14 = arith.mulf %12, %13 : vector<1x1x512xf32>
    %15 = vector.shape_cast %9 : vector<1x512xf32> to vector<1x1x512xf32>
    %16 = arith.addf %14, %15 : vector<1x1x512xf32>
    %c0_12 = arith.constant 0 : index
    %c0_13 = arith.constant 0 : index
    %c0_14 = arith.constant 0 : index
    %17 = vector.load %arg4[%c0_12, %c0_13, %c0_14] : memref<1x21x512xf32, #tpu.memory_space<vmem>>, vector<1x1x512xf32>
    tpu.vector_store %arg4[%c0_12, %c0_13, %c0_14], %16 {strides = array<i32>} : memref<1x21x512xf32, #tpu.memory_space<vmem>>, vector<1x1x512xf32>,
    %18 = vector.extract_strided_slice %7 {offsets = [0, 1, 0], sizes = [1, 1, 512], strides = [1, 1, 1]} : vector<1x21x512xf32> to vector<1x1x512xf32>
    %cst_15 = arith.constant 4.000000e+00 : f32
    %19 = vector.broadcast %cst_15 : f32 to vector<1x1x512xf32>
    %20 = arith.mulf %18, %19 : vector<1x1x512xf32>
    %21 = vector.shape_cast %10 : vector<1x512xf32> to vector<1x1x512xf32>
    %22 = arith.addf %20, %21 : vector<1x1x512xf32>
    %c0_16 = arith.constant 0 : index
    %c1_17 = arith.constant 1 : index
    %c0_18 = arith.constant 0 : index
    %23 = vector.load %arg4[%c0_16, %c1_17, %c0_18] : memref<1x21x512xf32, #tpu.memory_space<vmem>>, vector<1x1x512xf32>
    tpu.vector_store %arg4[%c0_16, %c1_17, %c0_18], %22 {strides = array<i32>} : memref<1x21x512xf32, #tpu.memory_space<vmem>>, vector<1x1x512xf32>,
    %24 = vector.extract_strided_slice %7 {offsets = [0, 2, 0], sizes = [1, 1, 512], strides = [1, 1, 1]} : vector<1x21x512xf32> to vector<1x1x512xf32>
    %cst_19 = arith.constant 4.000000e+00 : f32
    %25 = vector.broadcast %cst_19 : f32 to vector<1x1x512xf32>
    %26 = arith.mulf %24, %25 : vector<1x1x512xf32>
    %27 = vector.shape_cast %11 : vector<1x512xf32> to vector<1x1x512xf32>
    %28 = arith.addf %26, %27 : vector<1x1x512xf32>
    %c0_20 = arith.constant 0 : index
    %c2_21 = arith.constant 2 : index
    %c0_22 = arith.constant 0 : index
    %29 = vector.load %arg4[%c0_20, %c2_21, %c0_22] : memref<1x21x512xf32, #tpu.memory_space<vmem>>, vector<1x1x512xf32>
    tpu.vector_store %arg4[%c0_20, %c2_21, %c0_22], %28 {strides = array<i32>} : memref<1x21x512xf32, #tpu.memory_space<vmem>>, vector<1x1x512xf32>,
    %30 = vector.extract_strided_slice %0 {offsets = [0, 3, 0], sizes = [1, 1, 512], strides = [1, 1, 1]} : vector<1x21x512xf32> to vector<1x1x512xf32>
    %31 = math.exp %30 : vector<1x1x512xf32>
    %cst_23 = arith.constant 8.000000e+00 : f32
    %32 = vector.broadcast %cst_23 : f32 to vector<1x1x512xf32>
    %33 = arith.mulf %31, %32 : vector<1x1x512xf32>
    %c0_24 = arith.constant 0 : index
    %c3 = arith.constant 3 : index
    %c0_25 = arith.constant 0 : index
    %34 = vector.load %arg4[%c0_24, %c3, %c0_25] : memref<1x21x512xf32, #tpu.memory_space<vmem>>, vector<1x1x512xf32>
    tpu.vector_store %arg4[%c0_24, %c3, %c0_25], %33 {strides = array<i32>} : memref<1x21x512xf32, #tpu.memory_space<vmem>>, vector<1x1x512xf32>,
    %35 = vector.extract_strided_slice %7 {offsets = [0, 7, 0], sizes = [1, 1, 512], strides = [1, 1, 1]} : vector<1x21x512xf32> to vector<1x1x512xf32>
    %cst_26 = arith.constant 4.000000e+00 : f32
    %36 = vector.broadcast %cst_26 : f32 to vector<1x1x512xf32>
    %37 = arith.mulf %35, %36 : vector<1x1x512xf32>
    %38 = vector.shape_cast %9 : vector<1x512xf32> to vector<1x1x512xf32>
    %39 = arith.addf %37, %38 : vector<1x1x512xf32>
    %c0_27 = arith.constant 0 : index
    %c7 = arith.constant 7 : index
    %c0_28 = arith.constant 0 : index
    %40 = vector.load %arg4[%c0_27, %c7, %c0_28] : memref<1x21x512xf32, #tpu.memory_space<vmem>>, vector<1x1x512xf32>
    tpu.vector_store %arg4[%c0_27, %c7, %c0_28], %39 {strides = array<i32>} : memref<1x21x512xf32, #tpu.memory_space<vmem>>, vector<1x1x512xf32>,
    %41 = vector.extract_strided_slice %7 {offsets = [0, 8, 0], sizes = [1, 1, 512], strides = [1, 1, 1]} : vector<1x21x512xf32> to vector<1x1x512xf32>
    %cst_29 = arith.constant 4.000000e+00 : f32
    %42 = vector.broadcast %cst_29 : f32 to vector<1x1x512xf32>
    %43 = arith.mulf %41, %42 : vector<1x1x512xf32>
    %44 = vector.shape_cast %10 : vector<1x512xf32> to vector<1x1x512xf32>
    %45 = arith.addf %43, %44 : vector<1x1x512xf32>
    %c0_30 = arith.constant 0 : index
    %c8 = arith.constant 8 : index
    %c0_31 = arith.constant 0 : index
    %46 = vector.load %arg4[%c0_30, %c8, %c0_31] : memref<1x21x512xf32, #tpu.memory_space<vmem>>, vector<1x1x512xf32>
    tpu.vector_store %arg4[%c0_30, %c8, %c0_31], %45 {strides = array<i32>} : memref<1x21x512xf32, #tpu.memory_space<vmem>>, vector<1x1x512xf32>,
    %47 = vector.extract_strided_slice %7 {offsets = [0, 9, 0], sizes = [1, 1, 512], strides = [1, 1, 1]} : vector<1x21x512xf32> to vector<1x1x512xf32>
    %cst_32 = arith.constant 4.000000e+00 : f32
    %48 = vector.broadcast %cst_32 : f32 to vector<1x1x512xf32>
    %49 = arith.mulf %47, %48 : vector<1x1x512xf32>
    %50 = vector.shape_cast %11 : vector<1x512xf32> to vector<1x1x512xf32>
    %51 = arith.addf %49, %50 : vector<1x1x512xf32>
    %c0_33 = arith.constant 0 : index
    %c9 = arith.constant 9 : index
    %c0_34 = arith.constant 0 : index
    %52 = vector.load %arg4[%c0_33, %c9, %c0_34] : memref<1x21x512xf32, #tpu.memory_space<vmem>>, vector<1x1x512xf32>
    tpu.vector_store %arg4[%c0_33, %c9, %c0_34], %51 {strides = array<i32>} : memref<1x21x512xf32, #tpu.memory_space<vmem>>, vector<1x1x512xf32>,
    %53 = vector.extract_strided_slice %0 {offsets = [0, 10, 0], sizes = [1, 1, 512], strides = [1, 1, 1]} : vector<1x21x512xf32> to vector<1x1x512xf32>
    %54 = math.exp %53 : vector<1x1x512xf32>
    %cst_35 = arith.constant 1.600000e+01 : f32
    %55 = vector.broadcast %cst_35 : f32 to vector<1x1x512xf32>
    %56 = arith.mulf %54, %55 : vector<1x1x512xf32>
    %c0_36 = arith.constant 0 : index
    %c10 = arith.constant 10 : index
    %c0_37 = arith.constant 0 : index
    %57 = vector.load %arg4[%c0_36, %c10, %c0_37] : memref<1x21x512xf32, #tpu.memory_space<vmem>>, vector<1x1x512xf32>
    tpu.vector_store %arg4[%c0_36, %c10, %c0_37], %56 {strides = array<i32>} : memref<1x21x512xf32, #tpu.memory_space<vmem>>, vector<1x1x512xf32>,
    %58 = vector.extract_strided_slice %7 {offsets = [0, 14, 0], sizes = [1, 1, 512], strides = [1, 1, 1]} : vector<1x21x512xf32> to vector<1x1x512xf32>
    %cst_38 = arith.constant 4.000000e+00 : f32
    %59 = vector.broadcast %cst_38 : f32 to vector<1x1x512xf32>
    %60 = arith.mulf %58, %59 : vector<1x1x512xf32>
    %61 = vector.shape_cast %9 : vector<1x512xf32> to vector<1x1x512xf32>
    %62 = arith.addf %60, %61 : vector<1x1x512xf32>
    %c0_39 = arith.constant 0 : index
    %c14 = arith.constant 14 : index
    %c0_40 = arith.constant 0 : index
    %63 = vector.load %arg4[%c0_39, %c14, %c0_40] : memref<1x21x512xf32, #tpu.memory_space<vmem>>, vector<1x1x512xf32>
    tpu.vector_store %arg4[%c0_39, %c14, %c0_40], %62 {strides = array<i32>} : memref<1x21x512xf32, #tpu.memory_space<vmem>>, vector<1x1x512xf32>,
    %64 = vector.extract_strided_slice %7 {offsets = [0, 15, 0], sizes = [1, 1, 512], strides = [1, 1, 1]} : vector<1x21x512xf32> to vector<1x1x512xf32>
    %cst_41 = arith.constant 4.000000e+00 : f32
    %65 = vector.broadcast %cst_41 : f32 to vector<1x1x512xf32>
    %66 = arith.mulf %64, %65 : vector<1x1x512xf32>
    %67 = vector.shape_cast %10 : vector<1x512xf32> to vector<1x1x512xf32>
    %68 = arith.addf %66, %67 : vector<1x1x512xf32>
    %c0_42 = arith.constant 0 : index
    %c15 = arith.constant 15 : index
    %c0_43 = arith.constant 0 : index
    %69 = vector.load %arg4[%c0_42, %c15, %c0_43] : memref<1x21x512xf32, #tpu.memory_space<vmem>>, vector<1x1x512xf32>
    tpu.vector_store %arg4[%c0_42, %c15, %c0_43], %68 {strides = array<i32>} : memref<1x21x512xf32, #tpu.memory_space<vmem>>, vector<1x1x512xf32>,
    %70 = vector.extract_strided_slice %7 {offsets = [0, 16, 0], sizes = [1, 1, 512], strides = [1, 1, 1]} : vector<1x21x512xf32> to vector<1x1x512xf32>
    %cst_44 = arith.constant 4.000000e+00 : f32
    %71 = vector.broadcast %cst_44 : f32 to vector<1x1x512xf32>
    %72 = arith.mulf %70, %71 : vector<1x1x512xf32>
    %73 = vector.shape_cast %11 : vector<1x512xf32> to vector<1x1x512xf32>
    %74 = arith.addf %72, %73 : vector<1x1x512xf32>
    %c0_45 = arith.constant 0 : index
    %c16 = arith.constant 16 : index
    %c0_46 = arith.constant 0 : index
    %75 = vector.load %arg4[%c0_45, %c16, %c0_46] : memref<1x21x512xf32, #tpu.memory_space<vmem>>, vector<1x1x512xf32>
    tpu.vector_store %arg4[%c0_45, %c16, %c0_46], %74 {strides = array<i32>} : memref<1x21x512xf32, #tpu.memory_space<vmem>>, vector<1x1x512xf32>,
    %76 = vector.extract_strided_slice %0 {offsets = [0, 17, 0], sizes = [1, 1, 512], strides = [1, 1, 1]} : vector<1x21x512xf32> to vector<1x1x512xf32>
    %77 = math.exp %76 : vector<1x1x512xf32>
    %cst_47 = arith.constant 1.200000e+01 : f32
    %78 = vector.broadcast %cst_47 : f32 to vector<1x1x512xf32>
    %79 = arith.mulf %77, %78 : vector<1x1x512xf32>
    %c0_48 = arith.constant 0 : index
    %c17 = arith.constant 17 : index
    %c0_49 = arith.constant 0 : index
    %80 = vector.load %arg4[%c0_48, %c17, %c0_49] : memref<1x21x512xf32, #tpu.memory_space<vmem>>, vector<1x1x512xf32>
    tpu.vector_store %arg4[%c0_48, %c17, %c0_49], %79 {strides = array<i32>} : memref<1x21x512xf32, #tpu.memory_space<vmem>>, vector<1x1x512xf32>,
    return
  }
  func.func @transform_0(%arg0: i32, %arg1: i32) -> (i32, i32) {
    %c0_i32 = arith.constant 0 : i32
    %c0_i32_0 = arith.constant 0 : i32
    return %c0_i32, %arg0 : i32, i32
  }
  func.func @transform_1(%arg0: i32, %arg1: i32) -> (i32, i32, i32) {
    %c0_i32 = arith.constant 0 : i32
    %c0_i32_0 = arith.constant 0 : i32
    return %arg1, %c0_i32, %arg0 : i32, i32, i32
  }
  func.func @transform_2(%arg0: i32, %arg1: i32) -> (i32, i32, i32) {
    %c0_i32 = arith.constant 0 : i32
    %c0_i32_0 = arith.constant 0 : i32
    return %arg1, %c0_i32, %arg0 : i32, i32, i32
  }
}

</mosaic_0001>

<llo_original>
// kernel: tpu_custom_call.1
$region0: #{tpu_custom_call.1}
  #allocation0 [shape = 'u32[]', space=smem, size = 0x4, offset = 0x4, fixed_abs, tag = 'smem constant byte address 0x4 - core index']
  #allocation1 [shape = 'u32[144,128]{1,0:T(1,128)}', space=vmem, size = 0x12000, scoped, tag = 'internal scratch']
  %s0 = inlined_call_operand.vmem [shape: f32[3,512], index: 0, kind: input, shape index: {}]
  %s1 = inlined_call_operand.vmem [shape: f32[2,21,512], index: 1, kind: input, shape index: {}]
  %s2 = inlined_call_operand.vmem [shape: f32[2,21,512], index: 2, kind: output, shape index: {}]
  %s3 = sld [smem:[#allocation0]]
  $region41: #{tpu_custom_call.1} parent=0
    _
  %s5 = ssub.s32 1, %s3
  %s6 = scalar_select 0, %s5, %s3
  loop: start=0, step=1, limit=4
  $region2: #{tpu_custom_call.1} parent=0 // loop_pre_header
    _
  $region3: #{tpu_custom_call.1} parent=0 // loop_header
    %s8 = sphi 0, %s12
    %p9 = scmp.ge.s32.totalorder %s8, 4
    %s15 = sphi 0, %s27
    %s16 = sphi 0, %s23
    %s17 = sphi 0, %s15
    %s18 = sphi 0, %s16
    %s19 = sphi 0, %s17
    %s20 = sphi 0, %s18
    %s30 = sphi 0, %s32
    %s33 = sphi 0, %s30
    %s34 = sphi 0, %s33
    %s50 = sphi 0, %s34
    %s58 = sphi 0, %s60
    %s61 = sphi 0, %s58
    %s62 = sphi 0, %s61
    %s78 = sphi 0, %s62
    %s86 = sphi 0, %s88
    %s89 = sphi 0, %s86
    %s90 = sphi 0, %s89
    %s106 = sphi 0, %s90
  $region4: #{tpu_custom_call.1} parent=0 // loop_header_branch
    %11 = sbr.rel (%p9) target = $region8
  $region5: #{tpu_custom_call.1} parent=0 // loop_body
    %s13 = ssub.s32 %s8, 1
    %s14 = ssub.s32 %s8, 2
    %s21 = sadd.s32 1, %s16
    %p22 = scmp.ge.s32.totalorder %s21, 2
    %s23 = scalar_select %p22, 0, %s21
    %s24 = sadd.s32 1, %s15
    %s25 = scalar_select %p22, %s24, %s15
    %p26 = scmp.ge.s32.totalorder %s25, 1
    %s27 = scalar_select %p26, 0, %s25
    %s28 = ssub.s32 %s15, %s27
    %p29 = scmp.eq.s32.totalorder %s28, 0
    %s31 = sadd.s32 %s30, 1
    %s32 = scalar_select %p29, %s30, %s31
    %p35 = pneg %p29
    %p36 = scmp.eq.s32.totalorder %s8, 1
    %p37 = por %p35, %p36
    %p38 = scmp.ne.s32.totalorder %s30, %s33
    %p39 = scmp.eq.s32.totalorder %s8, 0
    %p40 = por %p38, %p39
    %p41 = scmp.ne.s32.totalorder %s30, %s33
    %p42 = scmp.eq.s32.totalorder %s13, 1
    %p43 = por %p41, %p42
    %p44 = scmp.ne.s32.totalorder %s33, %s34
    %p45 = scmp.eq.s32.totalorder %s13, 0
    %p46 = por %p44, %p45
    %p47 = scmp.ne.s32.totalorder %s33, %s34
    %p48 = scmp.eq.s32.totalorder %s14, 1
    %p49 = por %p47, %p48
    %p51 = scmp.ne.s32.totalorder %s34, %s50
    %p52 = scmp.eq.s32.totalorder %s14, 0
    %p53 = por %p51, %p52
    %s54 = ssub.s32 %s16, %s23
    %s55 = ssub.s32 %s15, %s27
    %s56 = sor.u32 %s54, %s55
    %p57 = scmp.eq.s32.totalorder %s56, 0
    %s59 = sadd.s32 %s58, 1
    %s60 = scalar_select %p57, %s58, %s59
    %p63 = pneg %p57
    %p64 = scmp.eq.s32.totalorder %s8, 1
    %p65 = por %p63, %p64
    %p66 = scmp.ne.s32.totalorder %s58, %s61
    %p67 = scmp.eq.s32.totalorder %s8, 0
    %p68 = por %p66, %p67
    %p69 = scmp.ne.s32.totalorder %s58, %s61
    %p70 = scmp.eq.s32.totalorder %s13, 1
    %p71 = por %p69, %p70
    %p72 = scmp.ne.s32.totalorder %s61, %s62
    %p73 = scmp.eq.s32.totalorder %s13, 0
    %p74 = por %p72, %p73
    %p75 = scmp.ne.s32.totalorder %s61, %s62
    %p76 = scmp.eq.s32.totalorder %s14, 1
    %p77 = por %p75, %p76
    %p79 = scmp.ne.s32.totalorder %s62, %s78
    %p80 = scmp.eq.s32.totalorder %s14, 0
    %p81 = por %p79, %p80
    %s82 = ssub.s32 %s16, %s23
    %s83 = ssub.s32 %s15, %s27
    %s84 = sor.u32 %s82, %s83
    %p85 = scmp.eq.s32.totalorder %s84, 0
    %s87 = sadd.s32 %s86, 1
    %s88 = scalar_select %p85, %s86, %s87
    %p91 = pneg %p85
    %p92 = scmp.eq.s32.totalorder %s8, 1
    %p93 = por %p91, %p92
    %p94 = scmp.ne.s32.totalorder %s86, %s89
    %p95 = scmp.eq.s32.totalorder %s8, 0
    %p96 = por %p94, %p95
    %p97 = scmp.ne.s32.totalorder %s86, %s89
    %p98 = scmp.eq.s32.totalorder %s13, 1
    %p99 = por %p97, %p98
    %p100 = scmp.ne.s32.totalorder %s89, %s90
    %p101 = scmp.eq.s32.totalorder %s13, 0
    %p102 = por %p100, %p101
    %p103 = scmp.ne.s32.totalorder %s89, %s90
    %p104 = scmp.eq.s32.totalorder %s14, 1
    %p105 = por %p103, %p104
    %p107 = scmp.ne.s32.totalorder %s90, %s106
    %p108 = scmp.eq.s32.totalorder %s14, 0
    %p109 = por %p107, %p108
    %p110 = scmp.le.s32.totalorder 1, %s8
    %p111 = scmp.lt.s32.totalorder %s8, 3
    %p112 = pnand %p110, %p111
    %p113 = pneg %p112
    // Predicated region
    $region9: #{tpu_custom_call.1} parent=5 // pred_check
      _
    $region10: #{tpu_custom_call.1} parent=5 // pred_check_branch
      %115 = sbr.rel (%p112) target = $region12
    $region11: #{tpu_custom_call.1} parent=5 // pred_region
      %s116 = ssub.s32 %s8, 1
      // Predicated region
      $region13: #{tpu_custom_call.1} parent=11 // pred_check
        %p117 = pneg %p46
      $region14: #{tpu_custom_call.1} parent=11 // pred_check_branch
        %119 = sbr.rel (%p117) target = $region16
      $region15: #{tpu_custom_call.1} parent=11 // pred_region
        %s120 = smul.u32 4, %s17
        %p121 = scmp.lt.s32.totalorder %s120, 3
        %s122 = scalar_select %p121, %s120, 3
        %s123 = smul.addr %s122, 4
        %s124 = scalar_lea.vmem %s0, %s123
        %s125 = smul.u32 4, %s17
      $region16: #{tpu_custom_call.1} parent=11 // pred_fallthru
        _
    $region12: #{tpu_custom_call.1} parent=5 // pred_fallthru
      _
    %p126 = scmp.lt.s32.totalorder %s8, 2
    // Predicated region
    $region17: #{tpu_custom_call.1} parent=5 // pred_check
      %p127 = pneg %p126
    $region18: #{tpu_custom_call.1} parent=5 // pred_check_branch
      %129 = sbr.rel (%p127) target = $region20
    $region19: #{tpu_custom_call.1} parent=5 // pred_region
      // Predicated region
      $region21: #{tpu_custom_call.1} parent=19 // pred_check
        %p130 = pneg %p68
      $region22: #{tpu_custom_call.1} parent=19 // pred_check_branch
        %132 = sbr.rel (%p130) target = $region24
      $region23: #{tpu_custom_call.1} parent=19 // pred_region
        %s133 = smul.u32 4, %s15
        %p134 = scmp.lt.s32.totalorder %s16, 1
        %s135 = scalar_select %p134, %s16, 1
        %p136 = scmp.lt.s32.totalorder %s133, 3
        %s137 = scalar_select %p136, %s133, 3
        %s138 = smul.addr %s135, 12
        %s139 = sadd.s32 %s137, %s138
        %s140 = smul.addr %s139, 8
        %s141 = scalar_lea.vmem %s1, %s140
        %s142 = smul.u32 4, %s15
      $region24: #{tpu_custom_call.1} parent=19 // pred_fallthru
        _
    $region20: #{tpu_custom_call.1} parent=5 // pred_fallthru
      _
    %p143 = scmp.le.s32.totalorder 1, %s8
    %p144 = scmp.lt.s32.totalorder %s8, 3
    %p145 = pnand %p143, %p144
    %p146 = pneg %p145
    // Predicated region
    $region25: #{tpu_custom_call.1} parent=5 // pred_check
      _
    $region26: #{tpu_custom_call.1} parent=5 // pred_check_branch
      %148 = sbr.rel (%p145) target = $region28
    $region27: #{tpu_custom_call.1} parent=5 // pred_region
      %s149 = ssub.s32 %s8, 1
      %s150 = smul.u32 4, %s17
      %p151 = scmp.lt.s32.totalorder %s150, 3
      %s152 = scalar_select %p151, %s150, 3
      %s153 = smul.addr %s152, 4
      %s154 = scalar_lea.vmem %s0, %s153
      %p155 = pneg %p46
      %p156 = pneg %p43
      %s157 = smul.u32 4, %s17
      %p158 = scmp.lt.s32.totalorder %s18, 1
      %s159 = scalar_select %p158, %s18, 1
      %p160 = scmp.lt.s32.totalorder %s157, 3
      %s161 = scalar_select %p160, %s157, 3
      %s162 = smul.addr %s159, 12
      %s163 = sadd.s32 %s161, %s162
      %s164 = smul.addr %s163, 8
      %s165 = scalar_lea.vmem %s1, %s164
      %p166 = pneg %p74
      %p167 = pneg %p71
      %p168 = pneg %p102
      %p169 = pneg %p99
      %s170 = smul.u32 4, %s17
      %p171 = scmp.lt.s32.totalorder %s18, 1
      %s172 = scalar_select %p171, %s18, 1
      %p173 = scmp.lt.s32.totalorder %s170, 3
      %s174 = scalar_select %p173, %s170, 3
      %s175 = smul.addr %s172, 12
      %s176 = sadd.s32 %s174, %s175
      %s177 = smul.addr %s176, 8
      %s178 = scalar_lea.vmem %s2, %s177
      %s179 = smul.u32 4, %s17
      %p180 = scmp.lt.s32.totalorder %s179, 3
      %s181 = scalar_select %p180, %s179, 3
      %s182 = smul.addr %s181, 4
      %s183 = scalar_lea.vmem %s0, %s182
      %s184 = smul.u32 4, %s17
      %s185 = smul.u32 4, %s17
      %p186 = scmp.lt.s32.totalorder %s18, 1
      %s187 = scalar_select %p186, %s18, 1
      %p188 = scmp.lt.s32.totalorder %s185, 3
      %s189 = scalar_select %p188, %s185, 3
      %s190 = smul.addr %s187, 12
      %s191 = sadd.s32 %s189, %s190
      %s192 = smul.addr %s191, 8
      %s193 = scalar_lea.vmem %s1, %s192
      %s194 = smul.u32 4, %s17
      %s195 = smul.u32 4, %s17
      %p196 = scmp.lt.s32.totalorder %s18, 1
      %s197 = scalar_select %p196, %s18, 1
      %p198 = scmp.lt.s32.totalorder %s195, 3
      %s199 = scalar_select %p198, %s195, 3
      %s200 = smul.addr %s197, 12
      %s201 = sadd.s32 %s199, %s200
      %s202 = smul.addr %s201, 8
      %s203 = scalar_lea.vmem %s2, %s202
      %s204 = smul.u32 4, %s17
      %v205 = vld [vmem:[%s193] sm:$0xff]
      %v206 = vld [vmem:[%s193 + $0x8] sm:$0xff]
      %v207 = vld [vmem:[%s193 + $0x10] sm:$0xff]
      %v208 = vld [vmem:[%s193 + $0x18] sm:$0xff]
      %v209 = vld [vmem:[%s193 + $0x20] sm:$0xff]
      %v210 = vld [vmem:[%s193 + $0x28] sm:$0xff]
      %v211 = vld [vmem:[%s193 + $0x30] sm:$0xff]
      %v212 = vld [vmem:[%s193 + $0x38] sm:$0xff]
      %v213 = vld [vmem:[%s193 + $0x40] sm:$0x1f]
      %v214 = vld [vmem:[%s193 + $0x48] sm:$0x1f]
      %v215 = vld [vmem:[%s193 + $0x50] sm:$0x1f]
      %v216 = vld [vmem:[%s193 + $0x58] sm:$0x1f]
      %v217 = vmul.f32 %v205, 0.5
      %v218 = vmul.f32 %v206, 0.5
      %v219 = vmul.f32 %v207, 0.5
      %v220 = vmul.f32 %v208, 0.5
      %v221 = vmul.f32 %v209, 0.5
      %v222 = vmul.f32 %v210, 0.5
      %v223 = vmul.f32 %v211, 0.5
      %v224 = vmul.f32 %v212, 0.5
      %v225 = vmul.f32 %v213, 0.5
      %v226 = vmul.f32 %v214, 0.5
      %v227 = vmul.f32 %v215, 0.5
      %v228 = vmul.f32 %v216, 0.5
      %v229 = vtanh.pop %v217
      %v230 = vtanh.pop %v218
      %v231 = vtanh.pop %v219
      %v232 = vtanh.pop %v220
      %v233 = vtanh.pop %v221
      %v234 = vtanh.pop %v222
      %v235 = vtanh.pop %v223
      %v236 = vtanh.pop %v224
      %v237 = vtanh.pop %v225
      %v238 = vtanh.pop %v226
      %v239 = vtanh.pop %v227
      %v240 = vtanh.pop %v228
      %v241 = vmul.f32 %v229, 0.5
      %v242 = vmul.f32 %v230, 0.5
      %v243 = vmul.f32 %v231, 0.5
      %v244 = vmul.f32 %v232, 0.5
      %v245 = vmul.f32 %v233, 0.5
      %v246 = vmul.f32 %v234, 0.5
      %v247 = vmul.f32 %v235, 0.5
      %v248 = vmul.f32 %v236, 0.5
      %v249 = vmul.f32 %v237, 0.5
      %v250 = vmul.f32 %v238, 0.5
      %v251 = vmul.f32 %v239, 0.5
      %v252 = vmul.f32 %v240, 0.5
      %v253 = vadd.f32 %v241, 0.5
      %v254 = vadd.f32 %v242, 0.5
      %v255 = vadd.f32 %v243, 0.5
      %v256 = vadd.f32 %v244, 0.5
      %v257 = vadd.f32 %v245, 0.5
      %v258 = vadd.f32 %v246, 0.5
      %v259 = vadd.f32 %v247, 0.5
      %v260 = vadd.f32 %v248, 0.5
      %v261 = vadd.f32 %v249, 0.5
      %v262 = vadd.f32 %v250, 0.5
      %v263 = vadd.f32 %v251, 0.5
      %v264 = vadd.f32 %v252, 0.5
      %265 = vst [vmem:[%s203] sm:$0xff] %v253
      %266 = vst [vmem:[%s203 + $0x8] sm:$0xff] %v254
      %267 = vst [vmem:[%s203 + $0x10] sm:$0xff] %v255
      %268 = vst [vmem:[%s203 + $0x18] sm:$0xff] %v256
      %269 = vst [vmem:[%s203 + $0x20] sm:$0xff] %v257
      %270 = vst [vmem:[%s203 + $0x28] sm:$0xff] %v258
      %271 = vst [vmem:[%s203 + $0x30] sm:$0xff] %v259
      %272 = vst [vmem:[%s203 + $0x38] sm:$0xff] %v260
      %273 = vst [vmem:[%s203 + $0x40] sm:$0x1f] %v261
      %274 = vst [vmem:[%s203 + $0x48] sm:$0x1f] %v262
      %275 = vst [vmem:[%s203 + $0x50] sm:$0x1f] %v263
      %276 = vst [vmem:[%s203 + $0x58] sm:$0x1f] %v264
      %v277 = vld [vmem:[%s183] ss:$4 sm:$0xf]
      %s278 = scalar_lea.vmem %s183, 1
      %v279 = vld [vmem:[%s278] ss:$4 sm:$0xf]
      %s280 = scalar_lea.vmem %s183, 2
      %v281 = vld [vmem:[%s280] ss:$4 sm:$0xf]
      %v282 = vmul.f32 %v253, 4.0
      %v283 = vmul.f32 %v254, 4.0
      %v284 = vmul.f32 %v255, 4.0
      %v285 = vmul.f32 %v256, 4.0
      %v287 = vlaneseq
      %v288 = vshrl.u32 %v287, 7
      %v289 = vsub.s32 0, %v288
      %v290 = vrot.slane %v277, %v289
      %v291 = vlaneseq
      %v292 = vshrl.u32 %v291, 7
      %v293 = vsub.s32 1, %v292
      %v294 = vrot.slane %v277, %v293
      %v295 = vlaneseq
      %v296 = vshrl.u32 %v295, 7
      %v297 = vsub.s32 2, %v296
      %v298 = vrot.slane %v277, %v297
      %v299 = vlaneseq
      %v300 = vshrl.u32 %v299, 7
      %v301 = vsub.s32 3, %v300
      %v302 = vrot.slane %v277, %v301
      %v307 = vadd.f32 %v282, %v290
      %v308 = vadd.f32 %v283, %v294
      %v309 = vadd.f32 %v284, %v298
      %v310 = vadd.f32 %v285, %v302
      %v315 = vcombine.low %v307, %v308
      %v316 = vcombine.low %v309, %v310
      %v318 = vunpack.c.l.s4 1966171168
      %v319 = vunpack.c.0.s8 %v318
      %v320 = vlaneseq
      %v321 = vshrl.u32 %v320, 7
      %v322 = vsub.s32 %v319, %v321
      %v323 = vrot.slane %v315, %v322
      %v325 = vunpack.c.l.s4 1966171168
      %v326 = vunpack.c.0.s8 %v325
      %v327 = vlaneseq
      %v328 = vshrl.u32 %v327, 7
      %v329 = vsub.s32 %v326, %v328
      %v330 = vrot.slane %v316, %v329
      %v331 = vcombine.low %v323, %v330
      %v333 = vunpack.c.l.s4 1966171168
      %v334 = vunpack.c.0.s8 %v333
      %v335 = vlaneseq
      %v336 = vshrl.u32 %v335, 7
      %v337 = vsub.s32 %v334, %v336
      %v338 = vrot.slane %v331, %v337
      %v340 = vlaneseq
      %vm341 = vcmp.ge.s32.totalorder %v340, 0
      %vm342 = vcmp.lt.s32.totalorder %v340, 512
      %vm343 = vmand %vm341, %vm342
      %344 = vst.msk [vmem:[%s203] ss:$8 sm:$0xf] %vm343, %v338
      %345 = vst.msk [vmem:[%s203] ss:$8 sm:$0x0] %vm343, %v338
      %v347 = vlaneseq
      %v348 = vshrl.u32 %v347, 7
      %v349 = vsub.s32 0, %v348
      %v350 = vrot.slane %v279, %v349
      %v351 = vlaneseq
      %v352 = vshrl.u32 %v351, 7
      %v353 = vsub.s32 1, %v352
      %v354 = vrot.slane %v279, %v353
      %v355 = vlaneseq
      %v356 = vshrl.u32 %v355, 7
      %v357 = vsub.s32 2, %v356
      %v358 = vrot.slane %v279, %v357
      %v359 = vlaneseq
      %v360 = vshrl.u32 %v359, 7
      %v361 = vsub.s32 3, %v360
      %v362 = vrot.slane %v279, %v361
      %v367 = vadd.f32 %v282, %v350
      %v368 = vadd.f32 %v283, %v354
      %v369 = vadd.f32 %v284, %v358
      %v370 = vadd.f32 %v285, %v362
      %v375 = vcombine.low %v367, %v368
      %v376 = vcombine.low %v369, %v370
      %v378 = vunpack.c.l.s4 1966171168
      %v379 = vunpack.c.0.s8 %v378
      %v380 = vlaneseq
      %v381 = vshrl.u32 %v380, 7
      %v382 = vsub.s32 %v379, %v381
      %v383 = vrot.slane %v375, %v382
      %v385 = vunpack.c.l.s4 1966171168
      %v386 = vunpack.c.0.s8 %v385
      %v387 = vlaneseq
      %v388 = vshrl.u32 %v387, 7
      %v389 = vsub.s32 %v386, %v388
      %v390 = vrot.slane %v376, %v389
      %v391 = vcombine.high %v383, %v390
      %v393 = vunpack.c.l.s4 1966171168
      %v394 = vunpack.c.0.s8 %v393
      %v395 = vlaneseq
      %v396 = vshrl.u32 %v395, 7
      %v397 = vsub.s32 %v394, %v396
      %v398 = vrot.slane %v391, %v397
      %s400 = scalar_lea.vmem %s203, 1
      %401 = vst.msk [vmem:[%s400] ss:$8 sm:$0xf] %vm343, %v398
      %402 = vst.msk [vmem:[%s400] ss:$8 sm:$0x0] %vm343, %v398
      %v404 = vlaneseq
      %v405 = vshrl.u32 %v404, 7
      %v406 = vsub.s32 0, %v405
      %v407 = vrot.slane %v281, %v406
      %v408 = vlaneseq
      %v409 = vshrl.u32 %v408, 7
      %v410 = vsub.s32 1, %v409
      %v411 = vrot.slane %v281, %v410
      %v412 = vlaneseq
      %v413 = vshrl.u32 %v412, 7
      %v414 = vsub.s32 2, %v413
      %v415 = vrot.slane %v281, %v414
      %v416 = vlaneseq
      %v417 = vshrl.u32 %v416, 7
      %v418 = vsub.s32 3, %v417
      %v419 = vrot.slane %v281, %v418
      %v424 = vadd.f32 %v282, %v407
      %v425 = vadd.f32 %v283, %v411
      %v426 = vadd.f32 %v284, %v415
      %v427 = vadd.f32 %v285, %v419
      %v432 = vcombine.low %v424, %v425
      %v433 = vcombine.low %v426, %v427
      %v435 = vunpack.c.l.s4 1966171168
      %v436 = vunpack.c.0.s8 %v435
      %v437 = vlaneseq
      %v438 = vshrl.u32 %v437, 7
      %v439 = vsub.s32 %v436, %v438
      %v440 = vrot.slane %v432, %v439
      %v442 = vunpack.c.l.s4 1966171168
      %v443 = vunpack.c.0.s8 %v442
      %v444 = vlaneseq
      %v445 = vshrl.u32 %v444, 7
      %v446 = vsub.s32 %v443, %v445
      %v447 = vrot.slane %v433, %v446
      %v448 = vcombine.low %v440, %v447
      %v450 = vunpack.c.l.s4 1966171168
      %v451 = vunpack.c.0.s8 %v450
      %v452 = vlaneseq
      %v453 = vshrl.u32 %v452, 7
      %v454 = vsub.s32 %v451, %v453
      %v455 = vrot.slane %v448, %v454
      %v456 = vcombine.high %v455, %v455
      %s458 = scalar_lea.vmem %s203, 2
      %459 = vst.msk [vmem:[%s458] ss:$8 sm:$0xf] %vm343, %v456
      %460 = vst.msk [vmem:[%s458] ss:$8 sm:$0x0] %vm343, %v456
      %v461 = vmul.f32 %v205, 1.442695
      %v462 = vpow.pop %v461
      %v463 = vmul.f32 %v206, 1.442695
      %v464 = vpow.pop %v463
      %v465 = vmul.f32 %v207, 1.442695
      %v466 = vpow.pop %v465
      %v467 = vmul.f32 %v208, 1.442695
      %v468 = vpow.pop %v467
      %v469 = vmul.f32 %v462, 8.0
      %v470 = vmul.f32 %v464, 8.0
      %v471 = vmul.f32 %v466, 8.0
      %v472 = vmul.f32 %v468, 8.0
      %v477 = vcombine.low %v469, %v470
      %v478 = vcombine.low %v471, %v472
      %v480 = vunpack.c.l.s4 1966171168
      %v481 = vunpack.c.0.s8 %v480
      %v482 = vlaneseq
      %v483 = vshrl.u32 %v482, 7
      %v484 = vsub.s32 %v481, %v483
      %v485 = vrot.slane %v477, %v484
      %v487 = vunpack.c.l.s4 1966171168
      %v488 = vunpack.c.0.s8 %v487
      %v489 = vlaneseq
      %v490 = vshrl.u32 %v489, 7
      %v491 = vsub.s32 %v488, %v490
      %v492 = vrot.slane %v478, %v491
      %v493 = vcombine.high %v485, %v492
      %v495 = vunpack.c.l.s4 1966171168
      %v496 = vunpack.c.0.s8 %v495
      %v497 = vlaneseq
      %v498 = vshrl.u32 %v497, 7
      %v499 = vsub.s32 %v496, %v498
      %v500 = vrot.slane %v493, %v499
      %v501 = vcombine.high %v500, %v500
      %s503 = scalar_lea.vmem %s203, 3
      %504 = vst.msk [vmem:[%s503] ss:$8 sm:$0xf] %vm343, %v501
      %505 = vst.msk [vmem:[%s503] ss:$8 sm:$0x0] %vm343, %v501
      %v506 = vcombine.high %v307, %v308
      %v507 = vcombine.high %v309, %v310
      %v509 = vunpack.c.l.s4 1966171168
      %v510 = vunpack.c.0.s8 %v509
      %v511 = vlaneseq
      %v512 = vshrl.u32 %v511, 7
      %v513 = vsub.s32 %v510, %v512
      %v514 = vrot.slane %v506, %v513
      %v516 = vunpack.c.l.s4 1966171168
      %v517 = vunpack.c.0.s8 %v516
      %v518 = vlaneseq
      %v519 = vshrl.u32 %v518, 7
      %v520 = vsub.s32 %v517, %v519
      %v521 = vrot.slane %v507, %v520
      %v522 = vcombine.high %v514, %v521
      %v524 = vunpack.c.l.s4 1966171168
      %v525 = vunpack.c.0.s8 %v524
      %v526 = vlaneseq
      %v527 = vshrl.u32 %v526, 7
      %v528 = vsub.s32 %v525, %v527
      %v529 = vrot.slane %v522, %v528
      %v530 = vcombine.high %v529, %v529
      %s532 = scalar_lea.vmem %s203, 7
      %533 = vst.msk [vmem:[%s532] ss:$8 sm:$0xf] %vm343, %v530
      %534 = vst.msk [vmem:[%s532] ss:$8 sm:$0x0] %vm343, %v530
      %v535 = vmul.f32 %v257, 4.0
      %v536 = vmul.f32 %v258, 4.0
      %v537 = vmul.f32 %v259, 4.0
      %v538 = vmul.f32 %v260, 4.0
      %v539 = vadd.f32 %v535, %v350
      %v540 = vadd.f32 %v536, %v354
      %v541 = vadd.f32 %v537, %v358
      %v542 = vadd.f32 %v538, %v362
      %v547 = vcombine.low %v539, %v540
      %v548 = vcombine.low %v541, %v542
      %v550 = vunpack.c.l.s4 1966171168
      %v551 = vunpack.c.0.s8 %v550
      %v552 = vlaneseq
      %v553 = vshrl.u32 %v552, 7
      %v554 = vsub.s32 %v551, %v553
      %v555 = vrot.slane %v547, %v554
      %v557 = vunpack.c.l.s4 1966171168
      %v558 = vunpack.c.0.s8 %v557
      %v559 = vlaneseq
      %v560 = vshrl.u32 %v559, 7
      %v561 = vsub.s32 %v558, %v560
      %v562 = vrot.slane %v548, %v561
      %v563 = vcombine.low %v555, %v562
      %v565 = vunpack.c.l.s4 1966171168
      %v566 = vunpack.c.0.s8 %v565
      %v567 = vlaneseq
      %v568 = vshrl.u32 %v567, 7
      %v569 = vsub.s32 %v566, %v568
      %v570 = vrot.slane %v563, %v569
      %s572 = scalar_lea.vmem %s203, 32
      %573 = vst.msk [vmem:[%s572] ss:$8 sm:$0xf] %vm343, %v570
      %574 = vst.msk [vmem:[%s572] ss:$8 sm:$0x0] %vm343, %v570
      %v575 = vadd.f32 %v535, %v407
      %v576 = vadd.f32 %v536, %v411
      %v577 = vadd.f32 %v537, %v415
      %v578 = vadd.f32 %v538, %v419
      %v583 = vcombine.low %v575, %v576
      %v584 = vcombine.low %v577, %v578
      %v586 = vunpack.c.l.s4 1966171168
      %v587 = vunpack.c.0.s8 %v586
      %v588 = vlaneseq
      %v589 = vshrl.u32 %v588, 7
      %v590 = vsub.s32 %v587, %v589
      %v591 = vrot.slane %v583, %v590
      %v593 = vunpack.c.l.s4 1966171168
      %v594 = vunpack.c.0.s8 %v593
      %v595 = vlaneseq
      %v596 = vshrl.u32 %v595, 7
      %v597 = vsub.s32 %v594, %v596
      %v598 = vrot.slane %v584, %v597
      %v599 = vcombine.high %v591, %v598
      %v601 = vunpack.c.l.s4 1966171168
      %v602 = vunpack.c.0.s8 %v601
      %v603 = vlaneseq
      %v604 = vshrl.u32 %v603, 7
      %v605 = vsub.s32 %v602, %v604
      %v606 = vrot.slane %v599, %v605
      %s608 = scalar_lea.vmem %s203, 33
      %609 = vst.msk [vmem:[%s608] ss:$8 sm:$0xf] %vm343, %v606
      %610 = vst.msk [vmem:[%s608] ss:$8 sm:$0x0] %vm343, %v606
      %v611 = vmul.f32 %v209, 1.442695
      %v612 = vpow.pop %v611
      %v613 = vmul.f32 %v210, 1.442695
      %v614 = vpow.pop %v613
      %v615 = vmul.f32 %v211, 1.442695
      %v616 = vpow.pop %v615
      %v617 = vmul.f32 %v212, 1.442695
      %v618 = vpow.pop %v617
      %v619 = vmul.f32 %v612, 16.0
      %v620 = vmul.f32 %v614, 16.0
      %v621 = vmul.f32 %v616, 16.0
      %v622 = vmul.f32 %v618, 16.0
      %v627 = vcombine.low %v619, %v620
      %v628 = vcombine.low %v621, %v622
      %v630 = vunpack.c.l.s4 1966171168
      %v631 = vunpack.c.0.s8 %v630
      %v632 = vlaneseq
      %v633 = vshrl.u32 %v632, 7
      %v634 = vsub.s32 %v631, %v633
      %v635 = vrot.slane %v627, %v634
      %v637 = vunpack.c.l.s4 1966171168
      %v638 = vunpack.c.0.s8 %v637
      %v639 = vlaneseq
      %v640 = vshrl.u32 %v639, 7
      %v641 = vsub.s32 %v638, %v640
      %v642 = vrot.slane %v628, %v641
      %v643 = vcombine.low %v635, %v642
      %v645 = vunpack.c.l.s4 1966171168
      %v646 = vunpack.c.0.s8 %v645
      %v647 = vlaneseq
      %v648 = vshrl.u32 %v647, 7
      %v649 = vsub.s32 %v646, %v648
      %v650 = vrot.slane %v643, %v649
      %v651 = vcombine.high %v650, %v650
      %s653 = scalar_lea.vmem %s203, 34
      %654 = vst.msk [vmem:[%s653] ss:$8 sm:$0xf] %vm343, %v651
      %655 = vst.msk [vmem:[%s653] ss:$8 sm:$0x0] %vm343, %v651
      %v656 = vadd.f32 %v535, %v290
      %v657 = vadd.f32 %v536, %v294
      %v658 = vadd.f32 %v537, %v298
      %v659 = vadd.f32 %v538, %v302
      %v664 = vcombine.high %v656, %v657
      %v665 = vcombine.high %v658, %v659
      %v667 = vunpack.c.l.s4 1966171168
      %v668 = vunpack.c.0.s8 %v667
      %v669 = vlaneseq
      %v670 = vshrl.u32 %v669, 7
      %v671 = vsub.s32 %v668, %v670
      %v672 = vrot.slane %v664, %v671
      %v674 = vunpack.c.l.s4 1966171168
      %v675 = vunpack.c.0.s8 %v674
      %v676 = vlaneseq
      %v677 = vshrl.u32 %v676, 7
      %v678 = vsub.s32 %v675, %v677
      %v679 = vrot.slane %v665, %v678
      %v680 = vcombine.low %v672, %v679
      %v682 = vunpack.c.l.s4 1966171168
      %v683 = vunpack.c.0.s8 %v682
      %v684 = vlaneseq
      %v685 = vshrl.u32 %v684, 7
      %v686 = vsub.s32 %v683, %v685
      %v687 = vrot.slane %v680, %v686
      %v688 = vcombine.high %v687, %v687
      %s690 = scalar_lea.vmem %s203, 38
      %691 = vst.msk [vmem:[%s690] ss:$8 sm:$0xf] %vm343, %v688
      %692 = vst.msk [vmem:[%s690] ss:$8 sm:$0x0] %vm343, %v688
      %v693 = vcombine.high %v539, %v540
      %v694 = vcombine.high %v541, %v542
      %v696 = vunpack.c.l.s4 1966171168
      %v697 = vunpack.c.0.s8 %v696
      %v698 = vlaneseq
      %v699 = vshrl.u32 %v698, 7
      %v700 = vsub.s32 %v697, %v699
      %v701 = vrot.slane %v693, %v700
      %v703 = vunpack.c.l.s4 1966171168
      %v704 = vunpack.c.0.s8 %v703
      %v705 = vlaneseq
      %v706 = vshrl.u32 %v705, 7
      %v707 = vsub.s32 %v704, %v706
      %v708 = vrot.slane %v694, %v707
      %v709 = vcombine.high %v701, %v708
      %v711 = vunpack.c.l.s4 1966171168
      %v712 = vunpack.c.0.s8 %v711
      %v713 = vlaneseq
      %v714 = vshrl.u32 %v713, 7
      %v715 = vsub.s32 %v712, %v714
      %v716 = vrot.slane %v709, %v715
      %v717 = vcombine.high %v716, %v716
      %s719 = scalar_lea.vmem %s203, 39
      %720 = vst.msk [vmem:[%s719] ss:$8 sm:$0xf] %vm343, %v717
      %721 = vst.msk [vmem:[%s719] ss:$8 sm:$0x0] %vm343, %v717
      %v722 = vmul.f32 %v261, 4.0
      %v723 = vmul.f32 %v262, 4.0
      %v724 = vmul.f32 %v263, 4.0
      %v725 = vmul.f32 %v264, 4.0
      %v726 = vadd.f32 %v722, %v407
      %v727 = vadd.f32 %v723, %v411
      %v728 = vadd.f32 %v724, %v415
      %v729 = vadd.f32 %v725, %v419
      %v734 = vcombine.low %v726, %v727
      %v735 = vcombine.low %v728, %v729
      %v737 = vunpack.c.l.s4 1966171168
      %v738 = vunpack.c.0.s8 %v737
      %v739 = vlaneseq
      %v740 = vshrl.u32 %v739, 7
      %v741 = vsub.s32 %v738, %v740
      %v742 = vrot.slane %v734, %v741
      %v744 = vunpack.c.l.s4 1966171168
      %v745 = vunpack.c.0.s8 %v744
      %v746 = vlaneseq
      %v747 = vshrl.u32 %v746, 7
      %v748 = vsub.s32 %v745, %v747
      %v749 = vrot.slane %v735, %v748
      %v750 = vcombine.low %v742, %v749
      %v752 = vunpack.c.l.s4 1966171168
      %v753 = vunpack.c.0.s8 %v752
      %v754 = vlaneseq
      %v755 = vshrl.u32 %v754, 7
      %v756 = vsub.s32 %v753, %v755
      %v757 = vrot.slane %v750, %v756
      %s759 = scalar_lea.vmem %s203, 64
      %760 = vst.msk [vmem:[%s759] ss:$8 sm:$0xf] %vm343, %v757
      %761 = vst.msk [vmem:[%s759] ss:$8 sm:$0x0] %vm343, %v757
      %v762 = vmul.f32 %v213, 1.442695
      %v763 = vpow.pop %v762
      %v764 = vmul.f32 %v214, 1.442695
      %v765 = vpow.pop %v764
      %v766 = vmul.f32 %v215, 1.442695
      %v767 = vpow.pop %v766
      %v768 = vmul.f32 %v216, 1.442695
      %v769 = vpow.pop %v768
      %v770 = vmul.f32 %v763, 12.0
      %v771 = vmul.f32 %v765, 12.0
      %v772 = vmul.f32 %v767, 12.0
      %v773 = vmul.f32 %v769, 12.0
      %v778 = vcombine.low %v770, %v771
      %v779 = vcombine.low %v772, %v773
      %v781 = vunpack.c.l.s4 1966171168
      %v782 = vunpack.c.0.s8 %v781
      %v783 = vlaneseq
      %v784 = vshrl.u32 %v783, 7
      %v785 = vsub.s32 %v782, %v784
      %v786 = vrot.slane %v778, %v785
      %v788 = vunpack.c.l.s4 1966171168
      %v789 = vunpack.c.0.s8 %v788
      %v790 = vlaneseq
      %v791 = vshrl.u32 %v790, 7
      %v792 = vsub.s32 %v789, %v791
      %v793 = vrot.slane %v779, %v792
      %v794 = vcombine.high %v786, %v793
      %v796 = vunpack.c.l.s4 1966171168
      %v797 = vunpack.c.0.s8 %v796
      %v798 = vlaneseq
      %v799 = vshrl.u32 %v798, 7
      %v800 = vsub.s32 %v797, %v799
      %v801 = vrot.slane %v794, %v800
      %s803 = scalar_lea.vmem %s203, 65
      %804 = vst.msk [vmem:[%s803] ss:$8 sm:$0xf] %vm343, %v801
      %805 = vst.msk [vmem:[%s803] ss:$8 sm:$0x0] %vm343, %v801
      %s806 = smul.u32 4, %s17
      %p807 = scmp.lt.s32.totalorder %s18, 1
      %s808 = scalar_select %p807, %s18, 1
      %p809 = scmp.lt.s32.totalorder %s806, 3
      %s810 = scalar_select %p809, %s806, 3
      %s811 = smul.addr %s808, 12
      %s812 = sadd.s32 %s810, %s811
      %s813 = smul.addr %s812, 8
      %s814 = scalar_lea.vmem %s2, %s813
      // Predicated region
      $region29: #{tpu_custom_call.1} parent=27 // pred_check
        %p815 = pneg %p99
      $region30: #{tpu_custom_call.1} parent=27 // pred_check_branch
        %817 = sbr.rel (%p815) target = $region32
      $region31: #{tpu_custom_call.1} parent=27 // pred_region
        %s818 = smul.u32 4, %s17
      $region32: #{tpu_custom_call.1} parent=27 // pred_fallthru
        _
    $region28: #{tpu_custom_call.1} parent=5 // pred_fallthru
      _
    %p819 = scmp.le.s32.totalorder 2, %s8
    // Predicated region
    $region33: #{tpu_custom_call.1} parent=5 // pred_check
      %p820 = pneg %p819
    $region34: #{tpu_custom_call.1} parent=5 // pred_check_branch
      %822 = sbr.rel (%p820) target = $region36
    $region35: #{tpu_custom_call.1} parent=5 // pred_region
      %s823 = ssub.s32 %s8, 2
      // Predicated region
      $region37: #{tpu_custom_call.1} parent=35 // pred_check
        %p824 = pneg %p105
      $region38: #{tpu_custom_call.1} parent=35 // pred_check_branch
        %826 = sbr.rel (%p824) target = $region40
      $region39: #{tpu_custom_call.1} parent=35 // pred_region
        %s827 = smul.u32 4, %s19
        %p828 = scmp.lt.s32.totalorder %s20, 1
        %s829 = scalar_select %p828, %s20, 1
        %p830 = scmp.lt.s32.totalorder %s827, 3
        %s831 = scalar_select %p830, %s827, 3
        %s832 = smul.addr %s829, 12
        %s833 = sadd.s32 %s831, %s832
        %s834 = smul.addr %s833, 8
        %s835 = scalar_lea.vmem %s2, %s834
      $region40: #{tpu_custom_call.1} parent=35 // pred_fallthru
        _
    $region36: #{tpu_custom_call.1} parent=5 // pred_fallthru
      _
  $region6: #{tpu_custom_call.1} parent=0 // loop_footer
    %s12 = sadd.s32 1, %s8
  $region7: #{tpu_custom_call.1} parent=0 // loop_footer_branch
    %7 = sbr.rel target = $region3
  $region8: #{tpu_custom_call.1} parent=0 // loop_exit
    _

</llo_original>
